<compile_context>
chip_gen: v6e
topology: v6e:2x2x1
jax: 0.10.0
libtpu: 0.0.40
codegen_flags: <defaults>
</compile_context>

<pallas_src>
import jax
import jax.numpy as jnp
from jax.experimental import pallas as pl
from jax.experimental.pallas import tpu as pltpu


def _lru_kernel(h_ref, p_ref, x_ref, gd_ref,
                w_px_ref, w_pp_ref, b_p_ref,
                w_hq_ref, w_xq_ref, b_q_ref,
                w_xrz_ref, w_hrz_ref, b_rz_ref,
                w_xn_ref, b_in_ref, w_hn_ref, b_hn_ref,
                nh_ref, bg_ref):
    f32 = jnp.float32
    x = x_ref[...]
    h = h_ref[...]
    p = p_ref[...]
    H = h.shape[1]

    # prefer_gate = sigmoid(Wp x + Up p)   (split-accumulate dots, no concat)
    pg = jax.nn.sigmoid(
        jnp.dot(x, w_px_ref[...], preferred_element_type=f32)
        + jnp.dot(p, w_pp_ref[...], preferred_element_type=f32)
        + b_p_ref[...])

    # leap decision as one scalar per row:
    #   score = (logit0 - logit1) + (gumbel0 - gumbel1);  gate = score >= 0
    xg = x * pg
    score = (jnp.dot(h, w_hq_ref[...], preferred_element_type=f32)
             + jnp.dot(xg, w_xq_ref[...], preferred_element_type=f32)
             + b_q_ref[...] + gd_ref[...])                       # (bt, 1)
    gate = (score >= 0.0).astype(f32)

    # GRUCell(x, h), PyTorch gate order (r, z, n):
    #   one fused sigmoid over the r/z block (2H lanes -> half the EUP pushes)
    rz = jax.nn.sigmoid(
        jnp.dot(x, w_xrz_ref[...], preferred_element_type=f32)
        + jnp.dot(h, w_hrz_ref[...], preferred_element_type=f32)
        + b_rz_ref[...])                                         # (bt, 2H)
    r = rz[:, :H]
    z = rz[:, H:]
    n = jnp.tanh(
        jnp.dot(x, w_xn_ref[...], preferred_element_type=f32) + b_in_ref[...]
        + r * (jnp.dot(h, w_hn_ref[...], preferred_element_type=f32)
               + b_hn_ref[...]))
    gru_h = (1.0 - z) * n + z * h

    # next_hidden = cell(x, h) * gate + h * (1 - gate)
    nh_ref[...] = gru_h * gate + h * (1.0 - gate)
    bg_ref[...] = gate


def _round_up(v, m):
    return -(-v // m) * m


def _pick_btile(B, max_tile=2048, min_split=1024):
    """Batch tile: multiple of 8, <= max_tile, >=2 tiles for large batches."""
    bp = _round_up(B, 8)
    if bp < min_split:
        return bp
    n_tiles = max(2, -(-bp // max_tile))      # >=2 grid steps (v7x megacore)
    return _round_up(-(-bp // n_tiles), 8)


@jax.jit
def lru_forward(pre_hidden, pre_prefer, x, gumbel, params):
    B, E = x.shape
    H = pre_hidden.shape[1]
    f32 = jnp.float32

    # ---- wrapper-side weight / bias prep (free, outside the kernel) ----
    w_px = params["Wp_w"].T                                   # (E, E)
    w_pp = params["Up_w"].T                                   # (H, E)
    b_p = (params["Wp_b"] + params["Up_b"])[None, :]          # (1, E)

    # leap logits collapsed to the class-0-minus-class-1 direction
    w_hq = (params["wq_w"][0] - params["wq_w"][1])[:, None]   # (H, 1)
    w_xq = (params["uq_w"][0] - params["uq_w"][1])[:, None]   # (E, 1)
    b_q = (params["wq_b"][0] - params["wq_b"][1]
           + params["uq_b"][0] - params["uq_b"][1]).reshape(1, 1)
    gdiff = gumbel[:, 0:1] - gumbel[:, 1:2]                   # (B, 1)

    # GRU weights split per gate group (no zero padding, no in-kernel concat)
    w_ih, w_hh = params["gru_w_ih"], params["gru_w_hh"]       # (3H,E), (3H,H)
    b_ih, b_hh = params["gru_b_ih"], params["gru_b_hh"]
    w_xrz = w_ih[:2 * H, :].T                                 # (E, 2H)
    w_hrz = w_hh[:2 * H, :].T                                 # (H, 2H)
    b_rz = (b_ih[:2 * H] + b_hh[:2 * H])[None, :]             # (1, 2H)
    w_xn = w_ih[2 * H:, :].T                                  # (E, H)
    b_in = b_ih[2 * H:][None, :]                              # (1, H)
    w_hn = w_hh[2 * H:, :].T                                  # (H, H)
    b_hn = b_hh[2 * H:][None, :]                              # (1, H)

    # ---- batch tiling + padding to a tile multiple ----
    bt = _pick_btile(B)
    n_tiles = -(-B // bt)
    Bp = n_tiles * bt
    pad = Bp - B
    h_in, p_in, x_in, gd_in = pre_hidden, pre_prefer, x, gdiff
    if pad:
        def _pad(a):
            return jnp.pad(a, ((0, pad), (0, 0)))
        h_in, p_in, x_in, gd_in = map(_pad, (h_in, p_in, x_in, gd_in))

    def row_spec(dim):
        return pl.BlockSpec((bt, dim), lambda i: (i, 0))

    def const_spec(arr):
        return pl.BlockSpec(arr.shape, lambda i: (0, 0))

    inputs = (h_in, p_in, x_in, gd_in,
              w_px, w_pp, b_p,
              w_hq, w_xq, b_q,
              w_xrz, w_hrz, b_rz,
              w_xn, b_in, w_hn, b_hn)

    in_specs = [row_spec(H), row_spec(H), row_spec(E), row_spec(1)]
    in_specs += [const_spec(a) for a in inputs[4:]]

    out_shapes = (jax.ShapeDtypeStruct((Bp, H), f32),
                  jax.ShapeDtypeStruct((Bp, 1), f32))
    out_specs = [row_spec(H), row_spec(1)]

    # advisory cost hint for XLA scheduling
    flops = 2 * Bp * ((E + H) * E + (E + H) * 1
                      + (E + H) * 2 * H + (E + H) * H)
    transcendentals = Bp * (E + 3 * H)
    weight_bytes = 4 * sum(int(a.size) for a in inputs[4:])
    bytes_accessed = 4 * Bp * (3 * H + E + 3) + weight_bytes

    next_hidden, binary_gate = pl.pallas_call(
        _lru_kernel,
        out_shape=out_shapes,
        grid=(n_tiles,),
        in_specs=in_specs,
        out_specs=out_specs,
        compiler_params=pltpu.CompilerParams(
            dimension_semantics=("parallel",)),
        cost_estimate=pl.CostEstimate(
            flops=flops, transcendentals=transcendentals,
            bytes_accessed=bytes_accessed),
    )(*inputs)
    return next_hidden[:B], binary_gate[:B]


def init_params(key, embed_size, hidden_size):
    ks = jax.random.split(key, 12)
    E, H = embed_size, hidden_size

    def kaiming(k, shape, fan_in):
        return jax.random.normal(k, shape, jnp.float32) * jnp.sqrt(2.0 / fan_in)

    def uniform(k, shape, bound):
        return jax.random.uniform(k, shape, jnp.float32, -bound, bound)

    gru_bound = 1.0 / jnp.sqrt(H)
    return {
        "Wp_w": kaiming(ks[0], (E, E), E),
        "Wp_b": uniform(ks[1], (E,), 1.0 / jnp.sqrt(E)),
        "Up_w": kaiming(ks[2], (E, H), H),
        "Up_b": uniform(ks[3], (E,), 1.0 / jnp.sqrt(H)),
        "wq_w": kaiming(ks[4], (2, H), H),
        "wq_b": uniform(ks[5], (2,), 1.0 / jnp.sqrt(H)),
        "uq_w": kaiming(ks[6], (2, E), E),
        "uq_b": uniform(ks[7], (2,), 1.0 / jnp.sqrt(E)),
        "gru_w_ih": uniform(ks[8], (3 * H, E), gru_bound),
        "gru_w_hh": uniform(ks[9], (3 * H, H), gru_bound),
        "gru_b_ih": uniform(ks[10], (3 * H,), gru_bound),
        "gru_b_hh": uniform(ks[11], (3 * H,), gru_bound),
    }


def _reference(pre_hidden, pre_prefer, x, gumbel, params):
    """Pure-JAX mirror of the PyTorch forward (for correctness check)."""
    H = pre_hidden.shape[1]
    pg = jax.nn.sigmoid(x @ params["Wp_w"].T + params["Wp_b"]
                        + pre_prefer @ params["Up_w"].T + params["Up_b"])
    logits = (pre_hidden @ params["wq_w"].T + params["wq_b"]
              + (x * pg) @ params["uq_w"].T + params["uq_b"])
    logits = jax.nn.log_softmax(logits, axis=1)
    y = logits + gumbel
    gate = (y[:, 0:1] >= y[:, 1:2]).astype(jnp.float32)
    gi = x @ params["gru_w_ih"].T + params["gru_b_ih"]
    gh = pre_hidden @ params["gru_w_hh"].T + params["gru_b_hh"]
    r = jax.nn.sigmoid(gi[:, :H] + gh[:, :H])
    z = jax.nn.sigmoid(gi[:, H:2 * H] + gh[:, H:2 * H])
    n = jnp.tanh(gi[:, 2 * H:] + r * gh[:, 2 * H:])
    gru_h = (1.0 - z) * n + z * pre_hidden
    nh = gru_h * gate + pre_hidden * (1.0 - gate)
    return nh, gate


if __name__ == "__main__":
    B, E, H = 8, 32, 32
    key = jax.random.PRNGKey(0)
    kp, kx, kh, kpref, kg = jax.random.split(key, 5)

    params = init_params(kp, E, H)
    x = jax.random.normal(kx, (B, E), jnp.float32)
    pre_hidden = jax.random.normal(kh, (B, H), jnp.float32)
    pre_prefer = jax.random.normal(kpref, (B, H), jnp.float32)
    # Gumbel(0,1) noise for the hard gumbel-softmax gate (sampled in JAX glue)
    u = jax.random.uniform(kg, (B, 2), jnp.float32, 1e-6, 1.0 - 1e-6)
    gumbel = -jnp.log(-jnp.log(u))

    next_hidden, binary_gate = lru_forward(pre_hidden, pre_prefer, x,
                                           gumbel, params)
    jax.block_until_ready((next_hidden, binary_gate))

    nh_ref, bg_ref = _reference(pre_hidden, pre_prefer, x, gumbel, params)
    assert next_hidden.shape == (B, H) and binary_gate.shape == (B, 1)
    assert bool(jnp.all(jnp.isfinite(next_hidden)))
    assert bool(jnp.all(binary_gate == bg_ref))
    assert bool(jnp.allclose(next_hidden, nh_ref, atol=2e-5, rtol=2e-5))
    print("KERNEL_OK")
</pallas_src>

<mosaic_0001>
module attributes {stable_mosaic.version = 11 : i64} {
  func.func @_lru_kernel(%arg0: i32, %arg1: memref<8x32xf32, #tpu.memory_space<vmem>>, %arg2: memref<8x32xf32, #tpu.memory_space<vmem>>, %arg3: memref<8x32xf32, #tpu.memory_space<vmem>>, %arg4: memref<8x1xf32, #tpu.memory_space<vmem>>, %arg5: memref<32x32xf32, #tpu.memory_space<vmem>>, %arg6: memref<32x32xf32, #tpu.memory_space<vmem>>, %arg7: memref<1x32xf32, #tpu.memory_space<vmem>>, %arg8: memref<32x1xf32, #tpu.memory_space<vmem>>, %arg9: memref<32x1xf32, #tpu.memory_space<vmem>>, %arg10: memref<1x1xf32, #tpu.memory_space<vmem>>, %arg11: memref<32x64xf32, #tpu.memory_space<vmem>>, %arg12: memref<32x64xf32, #tpu.memory_space<vmem>>, %arg13: memref<1x64xf32, #tpu.memory_space<vmem>>, %arg14: memref<32x32xf32, #tpu.memory_space<vmem>>, %arg15: memref<1x32xf32, #tpu.memory_space<vmem>>, %arg16: memref<32x32xf32, #tpu.memory_space<vmem>>, %arg17: memref<1x32xf32, #tpu.memory_space<vmem>>, %arg18: memref<8x32xf32, #tpu.memory_space<vmem>>, %arg19: memref<8x1xf32, #tpu.memory_space<vmem>>) attributes {dimension_semantics = [#tpu.dimension_semantics<parallel>], iteration_bounds = array<i64: 1>, scalar_prefetch = 0 : i64, scratch_operands = 0 : i64, tpu.core_type = #tpu.core_type<tc>, window_params = [{transform_indices = @transform_0, window_bounds = array<i64: 8, 32>}, {transform_indices = @transform_1, window_bounds = array<i64: 8, 32>}, {transform_indices = @transform_2, window_bounds = array<i64: 8, 32>}, {transform_indices = @transform_3, window_bounds = array<i64: 8, 1>}, {pipeline_mode = #tpu.pipeline_mode<synchronous>, transform_indices = @transform_4, window_bounds = array<i64: 32, 32>}, {pipeline_mode = #tpu.pipeline_mode<synchronous>, transform_indices = @transform_5, window_bounds = array<i64: 32, 32>}, {pipeline_mode = #tpu.pipeline_mode<synchronous>, transform_indices = @transform_6, window_bounds = array<i64: 1, 32>}, {pipeline_mode = #tpu.pipeline_mode<synchronous>, transform_indices = @transform_7, window_bounds = array<i64: 32, 1>}, {pipeline_mode = #tpu.pipeline_mode<synchronous>, transform_indices = @transform_8, window_bounds = array<i64: 32, 1>}, {pipeline_mode = #tpu.pipeline_mode<synchronous>, transform_indices = @transform_9, window_bounds = array<i64: 1, 1>}, {pipeline_mode = #tpu.pipeline_mode<synchronous>, transform_indices = @transform_10, window_bounds = array<i64: 32, 64>}, {pipeline_mode = #tpu.pipeline_mode<synchronous>, transform_indices = @transform_11, window_bounds = array<i64: 32, 64>}, {pipeline_mode = #tpu.pipeline_mode<synchronous>, transform_indices = @transform_12, window_bounds = array<i64: 1, 64>}, {pipeline_mode = #tpu.pipeline_mode<synchronous>, transform_indices = @transform_13, window_bounds = array<i64: 32, 32>}, {pipeline_mode = #tpu.pipeline_mode<synchronous>, transform_indices = @transform_14, window_bounds = array<i64: 1, 32>}, {pipeline_mode = #tpu.pipeline_mode<synchronous>, transform_indices = @transform_15, window_bounds = array<i64: 32, 32>}, {pipeline_mode = #tpu.pipeline_mode<synchronous>, transform_indices = @transform_16, window_bounds = array<i64: 1, 32>}, {transform_indices = @transform_17, window_bounds = array<i64: 8, 32>}, {transform_indices = @transform_18, window_bounds = array<i64: 8, 1>}]} {
    %c0 = arith.constant 0 : index
    %c0_0 = arith.constant 0 : index
    %0 = vector.load %arg3[%c0, %c0_0] : memref<8x32xf32, #tpu.memory_space<vmem>>, vector<8x32xf32>
    %c0_1 = arith.constant 0 : index
    %c0_2 = arith.constant 0 : index
    %1 = vector.load %arg1[%c0_1, %c0_2] : memref<8x32xf32, #tpu.memory_space<vmem>>, vector<8x32xf32>
    %c0_3 = arith.constant 0 : index
    %c0_4 = arith.constant 0 : index
    %2 = vector.load %arg2[%c0_3, %c0_4] : memref<8x32xf32, #tpu.memory_space<vmem>>, vector<8x32xf32>
    %c0_5 = arith.constant 0 : index
    %c0_6 = arith.constant 0 : index
    %3 = vector.load %arg5[%c0_5, %c0_6] : memref<32x32xf32, #tpu.memory_space<vmem>>, vector<32x32xf32>
    %cst = arith.constant dense<0.000000e+00> : vector<8x32xf32>
    %4 = tpu.matmul %0, %3, %cst {dimension_numbers = #tpu.dot_dimension_numbers<[1], [0], [0], [1], [0, 0, 1, 1], [], []>} : vector<8x32xf32>, vector<32x32xf32>, vector<8x32xf32> -> vector<8x32xf32>
    %c0_7 = arith.constant 0 : index
    %c0_8 = arith.constant 0 : index
    %5 = vector.load %arg6[%c0_7, %c0_8] : memref<32x32xf32, #tpu.memory_space<vmem>>, vector<32x32xf32>
    %cst_9 = arith.constant dense<0.000000e+00> : vector<8x32xf32>
    %6 = tpu.matmul %2, %5, %cst_9 {dimension_numbers = #tpu.dot_dimension_numbers<[1], [0], [0], [1], [0, 0, 1, 1], [], []>} : vector<8x32xf32>, vector<32x32xf32>, vector<8x32xf32> -> vector<8x32xf32>
    %7 = arith.addf %4, %6 : vector<8x32xf32>
    %c0_10 = arith.constant 0 : index
    %c0_11 = arith.constant 0 : index
    %8 = vector.load %arg7[%c0_10, %c0_11] : memref<1x32xf32, #tpu.memory_space<vmem>>, vector<1x32xf32>
    %9 = vector.broadcast %8 : vector<1x32xf32> to vector<8x32xf32>
    %10 = arith.addf %7, %9 : vector<8x32xf32>
    %11 = arith.negf %10 : vector<8x32xf32>
    %12 = math.exp %11 : vector<8x32xf32>
    %cst_12 = arith.constant 1.000000e+00 : f32
    %13 = vector.broadcast %cst_12 : f32 to vector<8x32xf32>
    %14 = arith.addf %13, %12 : vector<8x32xf32>
    %15 = arith.divf %13, %14 : vector<8x32xf32>
    %16 = arith.mulf %0, %15 : vector<8x32xf32>
    %c0_13 = arith.constant 0 : index
    %c0_14 = arith.constant 0 : index
    %17 = vector.load %arg8[%c0_13, %c0_14] : memref<32x1xf32, #tpu.memory_space<vmem>>, vector<32x1xf32>
    %cst_15 = arith.constant dense<0.000000e+00> : vector<8x1xf32>
    %18 = tpu.matmul %1, %17, %cst_15 {dimension_numbers = #tpu.dot_dimension_numbers<[1], [0], [0], [1], [0, 0, 1, 1], [], []>} : vector<8x32xf32>, vector<32x1xf32>, vector<8x1xf32> -> vector<8x1xf32>
    %c0_16 = arith.constant 0 : index
    %c0_17 = arith.constant 0 : index
    %19 = vector.load %arg9[%c0_16, %c0_17] : memref<32x1xf32, #tpu.memory_space<vmem>>, vector<32x1xf32>
    %cst_18 = arith.constant dense<0.000000e+00> : vector<8x1xf32>
    %20 = tpu.matmul %16, %19, %cst_18 {dimension_numbers = #tpu.dot_dimension_numbers<[1], [0], [0], [1], [0, 0, 1, 1], [], []>} : vector<8x32xf32>, vector<32x1xf32>, vector<8x1xf32> -> vector<8x1xf32>
    %21 = arith.addf %18, %20 : vector<8x1xf32>
    %c0_19 = arith.constant 0 : index
    %c0_20 = arith.constant 0 : index
    %22 = vector.load %arg10[%c0_19, %c0_20] : memref<1x1xf32, #tpu.memory_space<vmem>>, vector<1x1xf32>
    %23 = vector.broadcast %22 : vector<1x1xf32> to vector<8x1xf32>
    %24 = arith.addf %21, %23 : vector<8x1xf32>
    %c0_21 = arith.constant 0 : index
    %c0_22 = arith.constant 0 : index
    %25 = vector.load %arg4[%c0_21, %c0_22] : memref<8x1xf32, #tpu.memory_space<vmem>>, vector<8x1xf32>
    %26 = arith.addf %24, %25 : vector<8x1xf32>
    %cst_23 = arith.constant 0.000000e+00 : f32
    %27 = vector.broadcast %cst_23 : f32 to vector<8x1xf32>
    %28 = arith.cmpf oge, %26, %27 : vector<8x1xf32>
    %29 = arith.extui %28 : vector<8x1xi1> to vector<8x1xi32>
    %30 = arith.sitofp %29 : vector<8x1xi32> to vector<8x1xf32>
    %c0_24 = arith.constant 0 : index
    %c0_25 = arith.constant 0 : index
    %31 = vector.load %arg11[%c0_24, %c0_25] : memref<32x64xf32, #tpu.memory_space<vmem>>, vector<32x64xf32>
    %cst_26 = arith.constant dense<0.000000e+00> : vector<8x64xf32>
    %32 = tpu.matmul %0, %31, %cst_26 {dimension_numbers = #tpu.dot_dimension_numbers<[1], [0], [0], [1], [0, 0, 1, 1], [], []>} : vector<8x32xf32>, vector<32x64xf32>, vector<8x64xf32> -> vector<8x64xf32>
    %c0_27 = arith.constant 0 : index
    %c0_28 = arith.constant 0 : index
    %33 = vector.load %arg12[%c0_27, %c0_28] : memref<32x64xf32, #tpu.memory_space<vmem>>, vector<32x64xf32>
    %cst_29 = arith.constant dense<0.000000e+00> : vector<8x64xf32>
    %34 = tpu.matmul %1, %33, %cst_29 {dimension_numbers = #tpu.dot_dimension_numbers<[1], [0], [0], [1], [0, 0, 1, 1], [], []>} : vector<8x32xf32>, vector<32x64xf32>, vector<8x64xf32> -> vector<8x64xf32>
    %35 = arith.addf %32, %34 : vector<8x64xf32>
    %c0_30 = arith.constant 0 : index
    %c0_31 = arith.constant 0 : index
    %36 = vector.load %arg13[%c0_30, %c0_31] : memref<1x64xf32, #tpu.memory_space<vmem>>, vector<1x64xf32>
    %37 = vector.broadcast %36 : vector<1x64xf32> to vector<8x64xf32>
    %38 = arith.addf %35, %37 : vector<8x64xf32>
    %39 = arith.negf %38 : vector<8x64xf32>
    %40 = math.exp %39 : vector<8x64xf32>
    %cst_32 = arith.constant 1.000000e+00 : f32
    %41 = vector.broadcast %cst_32 : f32 to vector<8x64xf32>
    %42 = arith.addf %41, %40 : vector<8x64xf32>
    %43 = arith.divf %41, %42 : vector<8x64xf32>
    %44 = vector.extract_strided_slice %43 {offsets = [0, 0], sizes = [8, 32], strides = [1, 1]} : vector<8x64xf32> to vector<8x32xf32>
    %45 = vector.extract_strided_slice %43 {offsets = [0, 32], sizes = [8, 32], strides = [1, 1]} : vector<8x64xf32> to vector<8x32xf32>
    %c0_33 = arith.constant 0 : index
    %c0_34 = arith.constant 0 : index
    %46 = vector.load %arg14[%c0_33, %c0_34] : memref<32x32xf32, #tpu.memory_space<vmem>>, vector<32x32xf32>
    %cst_35 = arith.constant dense<0.000000e+00> : vector<8x32xf32>
    %47 = tpu.matmul %0, %46, %cst_35 {dimension_numbers = #tpu.dot_dimension_numbers<[1], [0], [0], [1], [0, 0, 1, 1], [], []>} : vector<8x32xf32>, vector<32x32xf32>, vector<8x32xf32> -> vector<8x32xf32>
    %c0_36 = arith.constant 0 : index
    %c0_37 = arith.constant 0 : index
    %48 = vector.load %arg15[%c0_36, %c0_37] : memref<1x32xf32, #tpu.memory_space<vmem>>, vector<1x32xf32>
    %49 = vector.broadcast %48 : vector<1x32xf32> to vector<8x32xf32>
    %50 = arith.addf %47, %49 : vector<8x32xf32>
    %c0_38 = arith.constant 0 : index
    %c0_39 = arith.constant 0 : index
    %51 = vector.load %arg16[%c0_38, %c0_39] : memref<32x32xf32, #tpu.memory_space<vmem>>, vector<32x32xf32>
    %cst_40 = arith.constant dense<0.000000e+00> : vector<8x32xf32>
    %52 = tpu.matmul %1, %51, %cst_40 {dimension_numbers = #tpu.dot_dimension_numbers<[1], [0], [0], [1], [0, 0, 1, 1], [], []>} : vector<8x32xf32>, vector<32x32xf32>, vector<8x32xf32> -> vector<8x32xf32>
    %c0_41 = arith.constant 0 : index
    %c0_42 = arith.constant 0 : index
    %53 = vector.load %arg17[%c0_41, %c0_42] : memref<1x32xf32, #tpu.memory_space<vmem>>, vector<1x32xf32>
    %54 = vector.broadcast %53 : vector<1x32xf32> to vector<8x32xf32>
    %55 = arith.addf %52, %54 : vector<8x32xf32>
    %56 = arith.mulf %44, %55 : vector<8x32xf32>
    %57 = arith.addf %50, %56 : vector<8x32xf32>
    %58 = math.tanh %57 : vector<8x32xf32>
    %cst_43 = arith.constant 1.000000e+00 : f32
    %59 = vector.broadcast %cst_43 : f32 to vector<8x32xf32>
    %60 = arith.subf %59, %45 : vector<8x32xf32>
    %61 = arith.mulf %60, %58 : vector<8x32xf32>
    %62 = arith.mulf %45, %1 : vector<8x32xf32>
    %63 = arith.addf %61, %62 : vector<8x32xf32>
    %64 = vector.broadcast %30 : vector<8x1xf32> to vector<8x32xf32>
    %65 = arith.mulf %63, %64 : vector<8x32xf32>
    %cst_44 = arith.constant 1.000000e+00 : f32
    %66 = vector.broadcast %cst_44 : f32 to vector<8x1xf32>
    %67 = arith.subf %66, %30 : vector<8x1xf32>
    %68 = vector.broadcast %67 : vector<8x1xf32> to vector<8x32xf32>
    %69 = arith.mulf %1, %68 : vector<8x32xf32>
    %70 = arith.addf %65, %69 : vector<8x32xf32>
    %c0_45 = arith.constant 0 : index
    %c0_46 = arith.constant 0 : index
    %71 = vector.load %arg18[%c0_45, %c0_46] : memref<8x32xf32, #tpu.memory_space<vmem>>, vector<8x32xf32>
    tpu.vector_store %arg18[%c0_45, %c0_46], %70 {strides = array<i32>} : memref<8x32xf32, #tpu.memory_space<vmem>>, vector<8x32xf32>,
    %c0_47 = arith.constant 0 : index
    %c0_48 = arith.constant 0 : index
    %72 = vector.load %arg19[%c0_47, %c0_48] : memref<8x1xf32, #tpu.memory_space<vmem>>, vector<8x1xf32>
    tpu.vector_store %arg19[%c0_47, %c0_48], %30 {strides = array<i32>} : memref<8x1xf32, #tpu.memory_space<vmem>>, vector<8x1xf32>,
    return
  }
  func.func @transform_0(%arg0: i32) -> (i32, i32) {
    %c0_i32 = arith.constant 0 : i32
    %c0_i32_0 = arith.constant 0 : i32
    return %arg0, %c0_i32 : i32, i32
  }
  func.func @transform_1(%arg0: i32) -> (i32, i32) {
    %c0_i32 = arith.constant 0 : i32
    %c0_i32_0 = arith.constant 0 : i32
    return %arg0, %c0_i32 : i32, i32
  }
  func.func @transform_2(%arg0: i32) -> (i32, i32) {
    %c0_i32 = arith.constant 0 : i32
    %c0_i32_0 = arith.constant 0 : i32
    return %arg0, %c0_i32 : i32, i32
  }
  func.func @transform_3(%arg0: i32) -> (i32, i32) {
    %c0_i32 = arith.constant 0 : i32
    %c0_i32_0 = arith.constant 0 : i32
    return %arg0, %c0_i32 : i32, i32
  }
  func.func @transform_4(%arg0: i32) -> (i32, i32) {
    %c0_i32 = arith.constant 0 : i32
    %c0_i32_0 = arith.constant 0 : i32
    %c0_i32_1 = arith.constant 0 : i32
    return %c0_i32, %c0_i32_0 : i32, i32
  }
  func.func @transform_5(%arg0: i32) -> (i32, i32) {
    %c0_i32 = arith.constant 0 : i32
    %c0_i32_0 = arith.constant 0 : i32
    %c0_i32_1 = arith.constant 0 : i32
    return %c0_i32, %c0_i32_0 : i32, i32
  }
  func.func @transform_6(%arg0: i32) -> (i32, i32) {
    %c0_i32 = arith.constant 0 : i32
    %c0_i32_0 = arith.constant 0 : i32
    %c0_i32_1 = arith.constant 0 : i32
    return %c0_i32, %c0_i32_0 : i32, i32
  }
  func.func @transform_7(%arg0: i32) -> (i32, i32) {
    %c0_i32 = arith.constant 0 : i32
    %c0_i32_0 = arith.constant 0 : i32
    %c0_i32_1 = arith.constant 0 : i32
    return %c0_i32, %c0_i32_0 : i32, i32
  }
  func.func @transform_8(%arg0: i32) -> (i32, i32) {
    %c0_i32 = arith.constant 0 : i32
    %c0_i32_0 = arith.constant 0 : i32
    %c0_i32_1 = arith.constant 0 : i32
    return %c0_i32, %c0_i32_0 : i32, i32
  }
  func.func @transform_9(%arg0: i32) -> (i32, i32) {
    %c0_i32 = arith.constant 0 : i32
    %c0_i32_0 = arith.constant 0 : i32
    %c0_i32_1 = arith.constant 0 : i32
    return %c0_i32, %c0_i32_0 : i32, i32
  }
  func.func @transform_10(%arg0: i32) -> (i32, i32) {
    %c0_i32 = arith.constant 0 : i32
    %c0_i32_0 = arith.constant 0 : i32
    %c0_i32_1 = arith.constant 0 : i32
    return %c0_i32, %c0_i32_0 : i32, i32
  }
  func.func @transform_11(%arg0: i32) -> (i32, i32) {
    %c0_i32 = arith.constant 0 : i32
    %c0_i32_0 = arith.constant 0 : i32
    %c0_i32_1 = arith.constant 0 : i32
    return %c0_i32, %c0_i32_0 : i32, i32
  }
  func.func @transform_12(%arg0: i32) -> (i32, i32) {
    %c0_i32 = arith.constant 0 : i32
    %c0_i32_0 = arith.constant 0 : i32
    %c0_i32_1 = arith.constant 0 : i32
    return %c0_i32, %c0_i32_0 : i32, i32
  }
  func.func @transform_13(%arg0: i32) -> (i32, i32) {
    %c0_i32 = arith.constant 0 : i32
    %c0_i32_0 = arith.constant 0 : i32
    %c0_i32_1 = arith.constant 0 : i32
    return %c0_i32, %c0_i32_0 : i32, i32
  }
  func.func @transform_14(%arg0: i32) -> (i32, i32) {
    %c0_i32 = arith.constant 0 : i32
    %c0_i32_0 = arith.constant 0 : i32
    %c0_i32_1 = arith.constant 0 : i32
    return %c0_i32, %c0_i32_0 : i32, i32
  }
  func.func @transform_15(%arg0: i32) -> (i32, i32) {
    %c0_i32 = arith.constant 0 : i32
    %c0_i32_0 = arith.constant 0 : i32
    %c0_i32_1 = arith.constant 0 : i32
    return %c0_i32, %c0_i32_0 : i32, i32
  }
  func.func @transform_16(%arg0: i32) -> (i32, i32) {
    %c0_i32 = arith.constant 0 : i32
    %c0_i32_0 = arith.constant 0 : i32
    %c0_i32_1 = arith.constant 0 : i32
    return %c0_i32, %c0_i32_0 : i32, i32
  }
  func.func @transform_17(%arg0: i32) -> (i32, i32) {
    %c0_i32 = arith.constant 0 : i32
    %c0_i32_0 = arith.constant 0 : i32
    return %arg0, %c0_i32 : i32, i32
  }
  func.func @transform_18(%arg0: i32) -> (i32, i32) {
    %c0_i32 = arith.constant 0 : i32
    %c0_i32_0 = arith.constant 0 : i32
    return %arg0, %c0_i32 : i32, i32
  }
}

</mosaic_0001>

<llo_original>
// kernel: sub.9
$region0: #{sub.9}
  #allocation0 [shape = 's32[1]{0}', space=sflag, size = 0x4, scoped, tag = 'scoped memory for sub.9']
  %s0 = inlined_call_operand.vmem [shape: f32[8,1], index: 0, kind: input, shape index: {}]
  %s1 = inlined_call_operand.vmem [shape: f32[8,1], index: 1, kind: input, shape index: {}]
  %s2 = inlined_call_operand.vmem [shape: f32[8,1], index: 2, kind: output, shape index: {}]
  %v3 = vld [vmem:[%s0] sm:$0xff]
  %v4 = vld [vmem:[%s1] sm:$0xff]
  %5 = xla_tuple %v3, %v4
  %6 = xla_tuple %5
  %v7 = vsub.f32 %v3, %v4
  %8 = xla_tuple %v7
  %9 = vst [vmem:[%s2] sm:$0xff] %v7

// kernel: lru_forward.1
$region0: #{lru_forward.1}
  #allocation0 [shape = 'u32[]', space=smem, size = 0x4, offset = 0x4, fixed_abs, tag = 'smem constant byte address 0x4 - core index']
  #allocation1 [shape = 'u32[144,128]{1,0:T(1,128)}', space=vmem, size = 0x12000, scoped, tag = 'internal scratch']
  #allocation2 [shape = 'f32[1,1]{1,0:T(1,128)S(1)}', space=vmem, size = 0x200, scoped, tag = 'scoped memory for lru_forward.1']
  %s0 = inlined_call_operand.vmem [shape: f32[8,32], index: 0, kind: input, shape index: {}]
  %s1 = inlined_call_operand.vmem [shape: f32[8,32], index: 1, kind: input, shape index: {}]
  %s2 = inlined_call_operand.vmem [shape: f32[8,32], index: 2, kind: input, shape index: {}]
  %s3 = inlined_call_operand.vmem [shape: f32[8,1], index: 3, kind: input, shape index: {}]
  %s4 = inlined_call_operand.vmem [shape: f32[32,32], index: 4, kind: input, shape index: {}]
  %s5 = inlined_call_operand.vmem [shape: f32[32,32], index: 5, kind: input, shape index: {}]
  %s6 = inlined_call_operand.vmem [shape: f32[1,32], index: 6, kind: input, shape index: {}]
  %s7 = inlined_call_operand.vmem [shape: f32[32,1], index: 7, kind: input, shape index: {}]
  %s8 = inlined_call_operand.vmem [shape: f32[32,1], index: 8, kind: input, shape index: {}]
  %s9 = inlined_call_operand.<no memory space> [shape: f32[1,1], index: 9, kind: input, shape index: {}]
  %s10 = inlined_call_operand.vmem [shape: f32[32,64], index: 10, kind: input, shape index: {}]
  %s11 = inlined_call_operand.vmem [shape: f32[32,64], index: 11, kind: input, shape index: {}]
  %s12 = inlined_call_operand.vmem [shape: f32[1,64], index: 12, kind: input, shape index: {}]
  %s13 = inlined_call_operand.vmem [shape: f32[32,32], index: 13, kind: input, shape index: {}]
  %s14 = inlined_call_operand.vmem [shape: f32[1,32], index: 14, kind: input, shape index: {}]
  %s15 = inlined_call_operand.vmem [shape: f32[32,32], index: 15, kind: input, shape index: {}]
  %s16 = inlined_call_operand.vmem [shape: f32[1,32], index: 16, kind: input, shape index: {}]
  %s17 = inlined_call_operand.hbm [shape: f32[8,32], index: 17, kind: output, shape index: {0}]
  %s18 = inlined_call_operand.vmem [shape: f32[8,1], index: 18, kind: output, shape index: {1}]
  %19 = xla_tuple %s17, %s18
  %s20 = sld [smem:[#allocation0]]
  $region86: #{lru_forward.1} parent=0
    _
  %s22 = ssub.s32 1, %s20
  %s23 = scalar_select 0, %s22, %s20
  %v24 = vstv %s9
  %25 = vst [vmem:[#allocation2] sm:$0x1] %v24
  $region1: #{lru_forward.1} parent=0
    #allocation3 [shape = 'u8[4096]{0}', space=vmem, size = 0x1000, scoped, tag = 'output window, operand 0, single buffered']
    #allocation4 [shape = 's32[1]{0}', space=sflag, size = 0x4, scoped, tag = 'scoped memory for lru_forward.1']
    %26 = vsyncpa [#allocation4], 0
    // Predicated region
    $region2: #{lru_forward.1} parent=1 // pred_check
      _
    $region3: #{lru_forward.1} parent=1 // pred_check_branch
      %28 = sbr.rel (0) target = $region5
    $region4: #{lru_forward.1} parent=1 // pred_region
      _
    $region5: #{lru_forward.1} parent=1 // pred_fallthru
      _
    // Predicated region
    $region6: #{lru_forward.1} parent=1 // pred_check
      _
    $region7: #{lru_forward.1} parent=1 // pred_check_branch
      %30 = sbr.rel (0) target = $region9
    $region8: #{lru_forward.1} parent=1 // pred_region
      _
    $region9: #{lru_forward.1} parent=1 // pred_fallthru
      _
    // Predicated region
    $region10: #{lru_forward.1} parent=1 // pred_check
      _
    $region11: #{lru_forward.1} parent=1 // pred_check_branch
      %32 = sbr.rel (0) target = $region13
    $region12: #{lru_forward.1} parent=1 // pred_region
      _
    $region13: #{lru_forward.1} parent=1 // pred_fallthru
      _
    // Predicated region
    $region14: #{lru_forward.1} parent=1 // pred_check
      _
    $region15: #{lru_forward.1} parent=1 // pred_check_branch
      %34 = sbr.rel (0) target = $region17
    $region16: #{lru_forward.1} parent=1 // pred_region
      _
    $region17: #{lru_forward.1} parent=1 // pred_fallthru
      _
    // Predicated region
    $region18: #{lru_forward.1} parent=1 // pred_check
      _
    $region19: #{lru_forward.1} parent=1 // pred_check_branch
      %36 = sbr.rel (0) target = $region21
    $region20: #{lru_forward.1} parent=1 // pred_region
      _
    $region21: #{lru_forward.1} parent=1 // pred_fallthru
      _
    // Predicated region
    $region22: #{lru_forward.1} parent=1 // pred_check
      _
    $region23: #{lru_forward.1} parent=1 // pred_check_branch
      %38 = sbr.rel (0) target = $region25
    $region24: #{lru_forward.1} parent=1 // pred_region
      _
    $region25: #{lru_forward.1} parent=1 // pred_fallthru
      _
    // Predicated region
    $region26: #{lru_forward.1} parent=1 // pred_check
      _
    $region27: #{lru_forward.1} parent=1 // pred_check_branch
      %40 = sbr.rel (0) target = $region29
    $region28: #{lru_forward.1} parent=1 // pred_region
      _
    $region29: #{lru_forward.1} parent=1 // pred_fallthru
      _
    // Predicated region
    $region30: #{lru_forward.1} parent=1 // pred_check
      _
    $region31: #{lru_forward.1} parent=1 // pred_check_branch
      %42 = sbr.rel (0) target = $region33
    $region32: #{lru_forward.1} parent=1 // pred_region
      _
    $region33: #{lru_forward.1} parent=1 // pred_fallthru
      _
    // Predicated region
    $region34: #{lru_forward.1} parent=1 // pred_check
      _
    $region35: #{lru_forward.1} parent=1 // pred_check_branch
      %44 = sbr.rel (0) target = $region37
    $region36: #{lru_forward.1} parent=1 // pred_region
      _
    $region37: #{lru_forward.1} parent=1 // pred_fallthru
      _
    // Predicated region
    $region38: #{lru_forward.1} parent=1 // pred_check
      _
    $region39: #{lru_forward.1} parent=1 // pred_check_branch
      %46 = sbr.rel (0) target = $region41
    $region40: #{lru_forward.1} parent=1 // pred_region
      _
    $region41: #{lru_forward.1} parent=1 // pred_fallthru
      _
    // Predicated region
    $region42: #{lru_forward.1} parent=1 // pred_check
      _
    $region43: #{lru_forward.1} parent=1 // pred_check_branch
      %48 = sbr.rel (0) target = $region45
    $region44: #{lru_forward.1} parent=1 // pred_region
      _
    $region45: #{lru_forward.1} parent=1 // pred_fallthru
      _
    // Predicated region
    $region46: #{lru_forward.1} parent=1 // pred_check
      _
    $region47: #{lru_forward.1} parent=1 // pred_check_branch
      %50 = sbr.rel (0) target = $region49
    $region48: #{lru_forward.1} parent=1 // pred_region
      _
    $region49: #{lru_forward.1} parent=1 // pred_fallthru
      _
    // Predicated region
    $region50: #{lru_forward.1} parent=1 // pred_check
      _
    $region51: #{lru_forward.1} parent=1 // pred_check_branch
      %52 = sbr.rel (0) target = $region53
    $region52: #{lru_forward.1} parent=1 // pred_region
      _
    $region53: #{lru_forward.1} parent=1 // pred_fallthru
      _
    // Predicated region
    $region54: #{lru_forward.1} parent=1 // pred_check
      _
    $region55: #{lru_forward.1} parent=1 // pred_check_branch
      %54 = sbr.rel (0) target = $region57
    $region56: #{lru_forward.1} parent=1 // pred_region
      _
    $region57: #{lru_forward.1} parent=1 // pred_fallthru
      _
    // Predicated region
    $region58: #{lru_forward.1} parent=1 // pred_check
      _
    $region59: #{lru_forward.1} parent=1 // pred_check_branch
      %56 = sbr.rel (0) target = $region61
    $region60: #{lru_forward.1} parent=1 // pred_region
      _
    $region61: #{lru_forward.1} parent=1 // pred_fallthru
      _
    // Predicated region
    $region62: #{lru_forward.1} parent=1 // pred_check
      _
    $region63: #{lru_forward.1} parent=1 // pred_check_branch
      %58 = sbr.rel (0) target = $region65
    $region64: #{lru_forward.1} parent=1 // pred_region
      _
    $region65: #{lru_forward.1} parent=1 // pred_fallthru
      _
    // Predicated region
    $region66: #{lru_forward.1} parent=1 // pred_check
      _
    $region67: #{lru_forward.1} parent=1 // pred_check_branch
      %60 = sbr.rel (0) target = $region69
    $region68: #{lru_forward.1} parent=1 // pred_region
      _
    $region69: #{lru_forward.1} parent=1 // pred_fallthru
      _
    %v61 = vld [vmem:[%s2] sm:$0xff]
    %v62 = vld [vmem:[%s0] sm:$0xff]
    %v63 = vld [vmem:[%s1] sm:$0xff]
    %v64 = vld [vmem:[%s4] sm:$0xff]
    %v65 = vld [vmem:[%s4 + $0x8] sm:$0xff]
    %v66 = vld [vmem:[%s4 + $0x10] sm:$0xff]
    %v67 = vld [vmem:[%s4 + $0x18] sm:$0xff]
    %v68 = vld [vmem:[%s5] sm:$0xff]
    %v69 = vld [vmem:[%s5 + $0x8] sm:$0xff]
    %v70 = vld [vmem:[%s5 + $0x10] sm:$0xff]
    %v71 = vld [vmem:[%s5 + $0x18] sm:$0xff]
    %vm72 = vcmask 261120
    %v74 = vsel %vm72, %v63, 0
    %76 = vmatprep.subr.mxu0 0.0
    %77 = vmatpush1.msra.mxu0 0.0
    %78 = vmatprep.subr.mxu0 0.0
    %79 = vmatpush1.msra.mxu0 0.0
    %80 = vmatprep.subr.mxu0 0.0
    %81 = vmatpush1.msra.mxu0 0.0
    %82 = vmatprep.subr.mxu0 0.0
    %83 = vmatpush1.msra.mxu0 0.0
    %84 = vmatprep.subr.mxu0 0.0
    %85 = vmatpush1.msra.mxu0 0.0
    %86 = vmatprep.subr.mxu0 0.0
    %87 = vmatpush1.msra.mxu0 0.0
    %88 = vmatprep.subr.mxu0 0.0
    %89 = vmatpush1.msra.mxu0 0.0
    %90 = vmatprep.subr.mxu0 0.0
    %91 = vmatpush1.msra.mxu0 0.0
    %92 = vmatprep.subr.mxu0 0.0
    %93 = vmatpush1.msra.mxu0 0.0
    %94 = vmatprep.subr.mxu0 0.0
    %95 = vmatpush1.msra.mxu0 0.0
    %96 = vmatprep.subr.mxu0 0.0
    %97 = vmatpush1.msra.mxu0 0.0
    %98 = vmatprep.subr.mxu0 0.0
    %99 = vmatpush1.msra.mxu0 0.0
    %100 = vmatprep.subr.mxu0 0.0
    %101 = vmatpush1.msra.mxu0 %v71
    %102 = vmatprep.subr.mxu0 0.0
    %103 = vmatpush1.msra.mxu0 %v70
    %104 = vmatprep.subr.mxu0 0.0
    %105 = vmatpush1.msra.mxu0 %v69
    %106 = vmatprep.subr.mxu0 0.0
    %107 = vmatpush1.msra.mxu0 %v68
    %108 = vmatprep.subr.mxu0 0.0
    %109 = vmatpush2.msra.mxu0 0.0
    %110 = vmatprep.subr.mxu0 0.0
    %111 = vmatpush2.msra.mxu0 0.0
    %112 = vmatprep.subr.mxu0 0.0
    %113 = vmatpush2.msra.mxu0 0.0
    %114 = vmatprep.subr.mxu0 0.0
    %115 = vmatpush2.msra.mxu0 0.0
    %116 = vmatprep.subr.mxu0 0.0
    %117 = vmatpush2.msra.mxu0 0.0
    %118 = vmatprep.subr.mxu0 0.0
    %119 = vmatpush2.msra.mxu0 0.0
    %120 = vmatprep.subr.mxu0 0.0
    %121 = vmatpush2.msra.mxu0 0.0
    %122 = vmatprep.subr.mxu0 0.0
    %123 = vmatpush2.msra.mxu0 0.0
    %124 = vmatprep.subr.mxu0 0.0
    %125 = vmatpush2.msra.mxu0 0.0
    %126 = vmatprep.subr.mxu0 0.0
    %127 = vmatpush2.msra.mxu0 0.0
    %128 = vmatprep.subr.mxu0 0.0
    %129 = vmatpush2.msra.mxu0 0.0
    %130 = vmatprep.subr.mxu0 0.0
    %131 = vmatpush2.msra.mxu0 0.0
    %132 = vmatprep.subr.mxu0 0.0
    %133 = vmatpush2.msra.mxu0 0.0
    %134 = vmatprep.subr.mxu0 0.0
    %135 = vmatpush2.msra.mxu0 0.0
    %136 = vmatprep.subr.mxu0 0.0
    %137 = vmatpush2.msra.mxu0 0.0
    %138 = vmatprep.subr.mxu0 0.0
    %139 = vmatpush2.msra.mxu0 0.0
    %140 = vmatprep.mubr.f32.mxu0 0.0
    %141 = vmatmul.mubr.f32.gmra.mxu0 %v74
    %v142 = vpop.f32.mrf.mxu0
    %v143 = vadd.f32 0.0, %v142
    %v144 = vpop.f32.mrf.mxu0
    %145 = vdwg.mxu0
    %v147 = vsel %vm72, %v61, 0
    %149 = vmatprep.subr.mxu0 0.0
    %150 = vmatpush1.msra.mxu0 0.0
    %151 = vmatprep.subr.mxu0 0.0
    %152 = vmatpush1.msra.mxu0 0.0
    %153 = vmatprep.subr.mxu0 0.0
    %154 = vmatpush1.msra.mxu0 0.0
    %155 = vmatprep.subr.mxu0 0.0
    %156 = vmatpush1.msra.mxu0 0.0
    %157 = vmatprep.subr.mxu0 0.0
    %158 = vmatpush1.msra.mxu0 0.0
    %159 = vmatprep.subr.mxu0 0.0
    %160 = vmatpush1.msra.mxu0 0.0
    %161 = vmatprep.subr.mxu0 0.0
    %162 = vmatpush1.msra.mxu0 0.0
    %163 = vmatprep.subr.mxu0 0.0
    %164 = vmatpush1.msra.mxu0 0.0
    %165 = vmatprep.subr.mxu0 0.0
    %166 = vmatpush1.msra.mxu0 0.0
    %167 = vmatprep.subr.mxu0 0.0
    %168 = vmatpush1.msra.mxu0 0.0
    %169 = vmatprep.subr.mxu0 0.0
    %170 = vmatpush1.msra.mxu0 0.0
    %171 = vmatprep.subr.mxu0 0.0
    %172 = vmatpush1.msra.mxu0 0.0
    %173 = vmatprep.subr.mxu0 0.0
    %174 = vmatpush1.msra.mxu0 %v67
    %175 = vmatprep.subr.mxu0 0.0
    %176 = vmatpush1.msra.mxu0 %v66
    %177 = vmatprep.subr.mxu0 0.0
    %178 = vmatpush1.msra.mxu0 %v65
    %179 = vmatprep.subr.mxu0 0.0
    %180 = vmatpush1.msra.mxu0 %v64
    %181 = vmatprep.subr.mxu0 0.0
    %182 = vmatpush2.msra.mxu0 0.0
    %183 = vmatprep.subr.mxu0 0.0
    %184 = vmatpush2.msra.mxu0 0.0
    %185 = vmatprep.subr.mxu0 0.0
    %186 = vmatpush2.msra.mxu0 0.0
    %187 = vmatprep.subr.mxu0 0.0
    %188 = vmatpush2.msra.mxu0 0.0
    %189 = vmatprep.subr.mxu0 0.0
    %190 = vmatpush2.msra.mxu0 0.0
    %191 = vmatprep.subr.mxu0 0.0
    %192 = vmatpush2.msra.mxu0 0.0
    %193 = vmatprep.subr.mxu0 0.0
    %194 = vmatpush2.msra.mxu0 0.0
    %195 = vmatprep.subr.mxu0 0.0
    %196 = vmatpush2.msra.mxu0 0.0
    %197 = vmatprep.subr.mxu0 0.0
    %198 = vmatpush2.msra.mxu0 0.0
    %199 = vmatprep.subr.mxu0 0.0
    %200 = vmatpush2.msra.mxu0 0.0
    %201 = vmatprep.subr.mxu0 0.0
    %202 = vmatpush2.msra.mxu0 0.0
    %203 = vmatprep.subr.mxu0 0.0
    %204 = vmatpush2.msra.mxu0 0.0
    %205 = vmatprep.subr.mxu0 0.0
    %206 = vmatpush2.msra.mxu0 0.0
    %207 = vmatprep.subr.mxu0 0.0
    %208 = vmatpush2.msra.mxu0 0.0
    %209 = vmatprep.subr.mxu0 0.0
    %210 = vmatpush2.msra.mxu0 0.0
    %211 = vmatprep.subr.mxu0 0.0
    %212 = vmatpush2.msra.mxu0 0.0
    %213 = vmatprep.mubr.f32.mxu0 0.0
    %214 = vmatmul.mubr.f32.gmra.mxu0 %v147
    %v215 = vpop.f32.mrf.mxu0
    %v216 = vadd.f32 %v143, %v215
    %v217 = vpop.f32.mrf.mxu0
    %218 = vdwg.mxu0
    %v219 = vld [vmem:[%s6] sm:$0x1]
    %v221 = vlaneseq
    %v222 = vshrl.u32 %v221, 7
    %v223 = vsub.s32 0, %v222
    %v224 = vrot.slane %v219, %v223
    %v226 = vadd.f32 %v216, %v224
    %v227 = vxor.u32 %v226, 2147483648
    %v228 = vmul.f32 %v227, 1.442695
    %v229 = vpow.pop %v228
    %v230 = vadd.f32 %v229, 1.0
    %v231 = vrcp.pop %v230
    %v232 = vmul.f32 1.0, %v231
    %v233 = vmul.f32 %v61, %v232
    %v234 = vld [vmem:[%s7] sm:$0xff]
    %v235 = vld [vmem:[%s7 + $0x8] sm:$0xff]
    %v236 = vld [vmem:[%s7 + $0x10] sm:$0xff]
    %v237 = vld [vmem:[%s7 + $0x18] sm:$0xff]
    %v238 = vld [vmem:[%s8] sm:$0xff]
    %v239 = vld [vmem:[%s8 + $0x8] sm:$0xff]
    %v240 = vld [vmem:[%s8 + $0x10] sm:$0xff]
    %v241 = vld [vmem:[%s8 + $0x18] sm:$0xff]
    %v243 = vsel %vm72, %v233, 0
    %245 = vmatprep.subr.mxu0 0.0
    %246 = vmatpush1.msra.mxu0 0.0
    %247 = vmatprep.subr.mxu0 0.0
    %248 = vmatpush1.msra.mxu0 0.0
    %249 = vmatprep.subr.mxu0 0.0
    %250 = vmatpush1.msra.mxu0 0.0
    %251 = vmatprep.subr.mxu0 0.0
    %252 = vmatpush1.msra.mxu0 0.0
    %253 = vmatprep.subr.mxu0 0.0
    %254 = vmatpush1.msra.mxu0 0.0
    %255 = vmatprep.subr.mxu0 0.0
    %256 = vmatpush1.msra.mxu0 0.0
    %257 = vmatprep.subr.mxu0 0.0
    %258 = vmatpush1.msra.mxu0 0.0
    %259 = vmatprep.subr.mxu0 0.0
    %260 = vmatpush1.msra.mxu0 0.0
    %261 = vmatprep.subr.mxu0 0.0
    %262 = vmatpush1.msra.mxu0 0.0
    %263 = vmatprep.subr.mxu0 0.0
    %264 = vmatpush1.msra.mxu0 0.0
    %265 = vmatprep.subr.mxu0 0.0
    %266 = vmatpush1.msra.mxu0 0.0
    %267 = vmatprep.subr.mxu0 0.0
    %268 = vmatpush1.msra.mxu0 0.0
    %269 = vmatprep.subr.mxu0 0.0
    %270 = vmatpush1.msra.mxu0 %v241
    %271 = vmatprep.subr.mxu0 0.0
    %272 = vmatpush1.msra.mxu0 %v240
    %273 = vmatprep.subr.mxu0 0.0
    %274 = vmatpush1.msra.mxu0 %v239
    %275 = vmatprep.subr.mxu0 0.0
    %276 = vmatpush1.msra.mxu0 %v238
    %277 = vmatprep.subr.mxu0 0.0
    %278 = vmatpush2.msra.mxu0 0.0
    %279 = vmatprep.subr.mxu0 0.0
    %280 = vmatpush2.msra.mxu0 0.0
    %281 = vmatprep.subr.mxu0 0.0
    %282 = vmatpush2.msra.mxu0 0.0
    %283 = vmatprep.subr.mxu0 0.0
    %284 = vmatpush2.msra.mxu0 0.0
    %285 = vmatprep.subr.mxu0 0.0
    %286 = vmatpush2.msra.mxu0 0.0
    %287 = vmatprep.subr.mxu0 0.0
    %288 = vmatpush2.msra.mxu0 0.0
    %289 = vmatprep.subr.mxu0 0.0
    %290 = vmatpush2.msra.mxu0 0.0
    %291 = vmatprep.subr.mxu0 0.0
    %292 = vmatpush2.msra.mxu0 0.0
    %293 = vmatprep.subr.mxu0 0.0
    %294 = vmatpush2.msra.mxu0 0.0
    %295 = vmatprep.subr.mxu0 0.0
    %296 = vmatpush2.msra.mxu0 0.0
    %297 = vmatprep.subr.mxu0 0.0
    %298 = vmatpush2.msra.mxu0 0.0
    %299 = vmatprep.subr.mxu0 0.0
    %300 = vmatpush2.msra.mxu0 0.0
    %301 = vmatprep.subr.mxu0 0.0
    %302 = vmatpush2.msra.mxu0 0.0
    %303 = vmatprep.subr.mxu0 0.0
    %304 = vmatpush2.msra.mxu0 0.0
    %305 = vmatprep.subr.mxu0 0.0
    %306 = vmatpush2.msra.mxu0 0.0
    %307 = vmatprep.subr.mxu0 0.0
    %308 = vmatpush2.msra.mxu0 0.0
    %309 = vmatprep.mubr.f32.mxu0 0.0
    %310 = vmatmul.mubr.f32.gmra.mxu0 %v243
    %v311 = vpop.f32.mrf.mxu0
    %v312 = vadd.f32 0.0, %v311
    %v313 = vpop.f32.mrf.mxu0
    %314 = vdwg.mxu0
    %v316 = vsel %vm72, %v62, 0
    %318 = vmatprep.subr.mxu0 0.0
    %319 = vmatpush1.msra.mxu0 0.0
    %320 = vmatprep.subr.mxu0 0.0
    %321 = vmatpush1.msra.mxu0 0.0
    %322 = vmatprep.subr.mxu0 0.0
    %323 = vmatpush1.msra.mxu0 0.0
    %324 = vmatprep.subr.mxu0 0.0
    %325 = vmatpush1.msra.mxu0 0.0
    %326 = vmatprep.subr.mxu0 0.0
    %327 = vmatpush1.msra.mxu0 0.0
    %328 = vmatprep.subr.mxu0 0.0
    %329 = vmatpush1.msra.mxu0 0.0
    %330 = vmatprep.subr.mxu0 0.0
    %331 = vmatpush1.msra.mxu0 0.0
    %332 = vmatprep.subr.mxu0 0.0
    %333 = vmatpush1.msra.mxu0 0.0
    %334 = vmatprep.subr.mxu0 0.0
    %335 = vmatpush1.msra.mxu0 0.0
    %336 = vmatprep.subr.mxu0 0.0
    %337 = vmatpush1.msra.mxu0 0.0
    %338 = vmatprep.subr.mxu0 0.0
    %339 = vmatpush1.msra.mxu0 0.0
    %340 = vmatprep.subr.mxu0 0.0
    %341 = vmatpush1.msra.mxu0 0.0
    %342 = vmatprep.subr.mxu0 0.0
    %343 = vmatpush1.msra.mxu0 %v237
    %344 = vmatprep.subr.mxu0 0.0
    %345 = vmatpush1.msra.mxu0 %v236
    %346 = vmatprep.subr.mxu0 0.0
    %347 = vmatpush1.msra.mxu0 %v235
    %348 = vmatprep.subr.mxu0 0.0
    %349 = vmatpush1.msra.mxu0 %v234
    %350 = vmatprep.subr.mxu0 0.0
    %351 = vmatpush2.msra.mxu0 0.0
    %352 = vmatprep.subr.mxu0 0.0
    %353 = vmatpush2.msra.mxu0 0.0
    %354 = vmatprep.subr.mxu0 0.0
    %355 = vmatpush2.msra.mxu0 0.0
    %356 = vmatprep.subr.mxu0 0.0
    %357 = vmatpush2.msra.mxu0 0.0
    %358 = vmatprep.subr.mxu0 0.0
    %359 = vmatpush2.msra.mxu0 0.0
    %360 = vmatprep.subr.mxu0 0.0
    %361 = vmatpush2.msra.mxu0 0.0
    %362 = vmatprep.subr.mxu0 0.0
    %363 = vmatpush2.msra.mxu0 0.0
    %364 = vmatprep.subr.mxu0 0.0
    %365 = vmatpush2.msra.mxu0 0.0
    %366 = vmatprep.subr.mxu0 0.0
    %367 = vmatpush2.msra.mxu0 0.0
    %368 = vmatprep.subr.mxu0 0.0
    %369 = vmatpush2.msra.mxu0 0.0
    %370 = vmatprep.subr.mxu0 0.0
    %371 = vmatpush2.msra.mxu0 0.0
    %372 = vmatprep.subr.mxu0 0.0
    %373 = vmatpush2.msra.mxu0 0.0
    %374 = vmatprep.subr.mxu0 0.0
    %375 = vmatpush2.msra.mxu0 0.0
    %376 = vmatprep.subr.mxu0 0.0
    %377 = vmatpush2.msra.mxu0 0.0
    %378 = vmatprep.subr.mxu0 0.0
    %379 = vmatpush2.msra.mxu0 0.0
    %380 = vmatprep.subr.mxu0 0.0
    %381 = vmatpush2.msra.mxu0 0.0
    %382 = vmatprep.mubr.f32.mxu0 0.0
    %383 = vmatmul.mubr.f32.gmra.mxu0 %v316
    %v384 = vpop.f32.mrf.mxu0
    %v385 = vadd.f32 %v312, %v384
    %v386 = vpop.f32.mrf.mxu0
    %387 = vdwg.mxu0
    %v388 = vld [vmem:[#allocation2] sm:$0x1]
    %v390 = vlaneseq
    %v391 = vshrl.u32 %v390, 7
    %v392 = vsub.s32 0, %v391
    %v393 = vrot.slane %v388, %v392
    %v395 = vadd.f32 %v385, %v393
    %v396 = vld [vmem:[%s3] sm:$0xff]
    %v397 = vadd.f32 %v395, %v396
    %vm398 = vcmp.ge.f32.partialorder %v397, 0.0
    %v399 = vsel %vm398, 1, 0
    %v400 = vcvt.s32.f32 %v399
    %v401 = vld [vmem:[%s10] sm:$0xff]
    %v402 = vld [vmem:[%s10 + $0x8] sm:$0xff]
    %v403 = vld [vmem:[%s10 + $0x10] sm:$0xff]
    %v404 = vld [vmem:[%s10 + $0x18] sm:$0xff]
    %v405 = vld [vmem:[%s11] sm:$0xff]
    %v406 = vld [vmem:[%s11 + $0x8] sm:$0xff]
    %v407 = vld [vmem:[%s11 + $0x10] sm:$0xff]
    %v408 = vld [vmem:[%s11 + $0x18] sm:$0xff]
    %409 = vmatprep.subr.mxu0 0.0
    %410 = vmatpush1.msra.mxu0 0.0
    %411 = vmatprep.subr.mxu0 0.0
    %412 = vmatpush1.msra.mxu0 0.0
    %413 = vmatprep.subr.mxu0 0.0
    %414 = vmatpush1.msra.mxu0 0.0
    %415 = vmatprep.subr.mxu0 0.0
    %416 = vmatpush1.msra.mxu0 0.0
    %417 = vmatprep.subr.mxu0 0.0
    %418 = vmatpush1.msra.mxu0 0.0
    %419 = vmatprep.subr.mxu0 0.0
    %420 = vmatpush1.msra.mxu0 0.0
    %421 = vmatprep.subr.mxu0 0.0
    %422 = vmatpush1.msra.mxu0 0.0
    %423 = vmatprep.subr.mxu0 0.0
    %424 = vmatpush1.msra.mxu0 0.0
    %425 = vmatprep.subr.mxu0 0.0
    %426 = vmatpush1.msra.mxu0 0.0
    %427 = vmatprep.subr.mxu0 0.0
    %428 = vmatpush1.msra.mxu0 0.0
    %429 = vmatprep.subr.mxu0 0.0
    %430 = vmatpush1.msra.mxu0 0.0
    %431 = vmatprep.subr.mxu0 0.0
    %432 = vmatpush1.msra.mxu0 0.0
    %433 = vmatprep.subr.mxu0 0.0
    %434 = vmatpush1.msra.mxu0 %v408
    %435 = vmatprep.subr.mxu0 0.0
    %436 = vmatpush1.msra.mxu0 %v407
    %437 = vmatprep.subr.mxu0 0.0
    %438 = vmatpush1.msra.mxu0 %v406
    %439 = vmatprep.subr.mxu0 0.0
    %440 = vmatpush1.msra.mxu0 %v405
    %441 = vmatprep.subr.mxu0 0.0
    %442 = vmatpush2.msra.mxu0 0.0
    %443 = vmatprep.subr.mxu0 0.0
    %444 = vmatpush2.msra.mxu0 0.0
    %445 = vmatprep.subr.mxu0 0.0
    %446 = vmatpush2.msra.mxu0 0.0
    %447 = vmatprep.subr.mxu0 0.0
    %448 = vmatpush2.msra.mxu0 0.0
    %449 = vmatprep.subr.mxu0 0.0
    %450 = vmatpush2.msra.mxu0 0.0
    %451 = vmatprep.subr.mxu0 0.0
    %452 = vmatpush2.msra.mxu0 0.0
    %453 = vmatprep.subr.mxu0 0.0
    %454 = vmatpush2.msra.mxu0 0.0
    %455 = vmatprep.subr.mxu0 0.0
    %456 = vmatpush2.msra.mxu0 0.0
    %457 = vmatprep.subr.mxu0 0.0
    %458 = vmatpush2.msra.mxu0 0.0
    %459 = vmatprep.subr.mxu0 0.0
    %460 = vmatpush2.msra.mxu0 0.0
    %461 = vmatprep.subr.mxu0 0.0
    %462 = vmatpush2.msra.mxu0 0.0
    %463 = vmatprep.subr.mxu0 0.0
    %464 = vmatpush2.msra.mxu0 0.0
    %465 = vmatprep.subr.mxu0 0.0
    %466 = vmatpush2.msra.mxu0 0.0
    %467 = vmatprep.subr.mxu0 0.0
    %468 = vmatpush2.msra.mxu0 0.0
    %469 = vmatprep.subr.mxu0 0.0
    %470 = vmatpush2.msra.mxu0 0.0
    %471 = vmatprep.subr.mxu0 0.0
    %472 = vmatpush2.msra.mxu0 0.0
    %473 = vmatprep.mubr.f32.mxu0 0.0
    %474 = vmatmul.mubr.f32.gmra.mxu0 %v316
    %v475 = vpop.f32.mrf.mxu0
    %v476 = vadd.f32 0.0, %v475
    %v477 = vpop.f32.mrf.mxu0
    %478 = vdwg.mxu0
    %479 = vmatprep.subr.mxu0 0.0
    %480 = vmatpush1.msra.mxu0 0.0
    %481 = vmatprep.subr.mxu0 0.0
    %482 = vmatpush1.msra.mxu0 0.0
    %483 = vmatprep.subr.mxu0 0.0
    %484 = vmatpush1.msra.mxu0 0.0
    %485 = vmatprep.subr.mxu0 0.0
    %486 = vmatpush1.msra.mxu0 0.0
    %487 = vmatprep.subr.mxu0 0.0
    %488 = vmatpush1.msra.mxu0 0.0
    %489 = vmatprep.subr.mxu0 0.0
    %490 = vmatpush1.msra.mxu0 0.0
    %491 = vmatprep.subr.mxu0 0.0
    %492 = vmatpush1.msra.mxu0 0.0
    %493 = vmatprep.subr.mxu0 0.0
    %494 = vmatpush1.msra.mxu0 0.0
    %495 = vmatprep.subr.mxu0 0.0
    %496 = vmatpush1.msra.mxu0 0.0
    %497 = vmatprep.subr.mxu0 0.0
    %498 = vmatpush1.msra.mxu0 0.0
    %499 = vmatprep.subr.mxu0 0.0
    %500 = vmatpush1.msra.mxu0 0.0
    %501 = vmatprep.subr.mxu0 0.0
    %502 = vmatpush1.msra.mxu0 0.0
    %503 = vmatprep.subr.mxu0 0.0
    %504 = vmatpush1.msra.mxu0 %v404
    %505 = vmatprep.subr.mxu0 0.0
    %506 = vmatpush1.msra.mxu0 %v403
    %507 = vmatprep.subr.mxu0 0.0
    %508 = vmatpush1.msra.mxu0 %v402
    %509 = vmatprep.subr.mxu0 0.0
    %510 = vmatpush1.msra.mxu0 %v401
    %511 = vmatprep.subr.mxu0 0.0
    %512 = vmatpush2.msra.mxu0 0.0
    %513 = vmatprep.subr.mxu0 0.0
    %514 = vmatpush2.msra.mxu0 0.0
    %515 = vmatprep.subr.mxu0 0.0
    %516 = vmatpush2.msra.mxu0 0.0
    %517 = vmatprep.subr.mxu0 0.0
    %518 = vmatpush2.msra.mxu0 0.0
    %519 = vmatprep.subr.mxu0 0.0
    %520 = vmatpush2.msra.mxu0 0.0
    %521 = vmatprep.subr.mxu0 0.0
    %522 = vmatpush2.msra.mxu0 0.0
    %523 = vmatprep.subr.mxu0 0.0
    %524 = vmatpush2.msra.mxu0 0.0
    %525 = vmatprep.subr.mxu0 0.0
    %526 = vmatpush2.msra.mxu0 0.0
    %527 = vmatprep.subr.mxu0 0.0
    %528 = vmatpush2.msra.mxu0 0.0
    %529 = vmatprep.subr.mxu0 0.0
    %530 = vmatpush2.msra.mxu0 0.0
    %531 = vmatprep.subr.mxu0 0.0
    %532 = vmatpush2.msra.mxu0 0.0
    %533 = vmatprep.subr.mxu0 0.0
    %534 = vmatpush2.msra.mxu0 0.0
    %535 = vmatprep.subr.mxu0 0.0
    %536 = vmatpush2.msra.mxu0 0.0
    %537 = vmatprep.subr.mxu0 0.0
    %538 = vmatpush2.msra.mxu0 0.0
    %539 = vmatprep.subr.mxu0 0.0
    %540 = vmatpush2.msra.mxu0 0.0
    %541 = vmatprep.subr.mxu0 0.0
    %542 = vmatpush2.msra.mxu0 0.0
    %543 = vmatprep.mubr.f32.mxu0 0.0
    %544 = vmatmul.mubr.f32.gmra.mxu0 %v147
    %v545 = vpop.f32.mrf.mxu0
    %v546 = vadd.f32 %v476, %v545
    %v547 = vpop.f32.mrf.mxu0
    %548 = vdwg.mxu0
    %v549 = vld [vmem:[%s12] sm:$0x1]
    %v551 = vlaneseq
    %v552 = vshrl.u32 %v551, 7
    %v553 = vsub.s32 0, %v552
    %v554 = vrot.slane %v549, %v553
    %v556 = vadd.f32 %v546, %v554
    %v557 = vxor.u32 %v556, 2147483648
    %v558 = vmul.f32 %v557, 1.442695
    %v559 = vpow.pop %v558
    %v560 = vadd.f32 %v559, 1.0
    %v561 = vrcp.pop %v560
    %v562 = vmul.f32 1.0, %v561
    %v563 = vld [vmem:[%s13] sm:$0xff]
    %v564 = vld [vmem:[%s13 + $0x8] sm:$0xff]
    %v565 = vld [vmem:[%s13 + $0x10] sm:$0xff]
    %v566 = vld [vmem:[%s13 + $0x18] sm:$0xff]
    %v567 = vld [vmem:[%s14] sm:$0x1]
    %v569 = vlaneseq
    %v570 = vshrl.u32 %v569, 7
    %v571 = vsub.s32 0, %v570
    %v572 = vrot.slane %v567, %v571
    %574 = vmatprep.subr.mxu0 0.0
    %575 = vmatpush1.msra.mxu0 0.0
    %576 = vmatprep.subr.mxu0 0.0
    %577 = vmatpush1.msra.mxu0 0.0
    %578 = vmatprep.subr.mxu0 0.0
    %579 = vmatpush1.msra.mxu0 0.0
    %580 = vmatprep.subr.mxu0 0.0
    %581 = vmatpush1.msra.mxu0 0.0
    %582 = vmatprep.subr.mxu0 0.0
    %583 = vmatpush1.msra.mxu0 0.0
    %584 = vmatprep.subr.mxu0 0.0
    %585 = vmatpush1.msra.mxu0 0.0
    %586 = vmatprep.subr.mxu0 0.0
    %587 = vmatpush1.msra.mxu0 0.0
    %588 = vmatprep.subr.mxu0 0.0
    %589 = vmatpush1.msra.mxu0 0.0
    %590 = vmatprep.subr.mxu0 0.0
    %591 = vmatpush1.msra.mxu0 0.0
    %592 = vmatprep.subr.mxu0 0.0
    %593 = vmatpush1.msra.mxu0 0.0
    %594 = vmatprep.subr.mxu0 0.0
    %595 = vmatpush1.msra.mxu0 0.0
    %596 = vmatprep.subr.mxu0 0.0
    %597 = vmatpush1.msra.mxu0 0.0
    %598 = vmatprep.subr.mxu0 0.0
    %599 = vmatpush1.msra.mxu0 %v566
    %600 = vmatprep.subr.mxu0 0.0
    %601 = vmatpush1.msra.mxu0 %v565
    %602 = vmatprep.subr.mxu0 0.0
    %603 = vmatpush1.msra.mxu0 %v564
    %604 = vmatprep.subr.mxu0 0.0
    %605 = vmatpush1.msra.mxu0 %v563
    %606 = vmatprep.subr.mxu0 0.0
    %607 = vmatpush2.msra.mxu0 0.0
    %608 = vmatprep.subr.mxu0 0.0
    %609 = vmatpush2.msra.mxu0 0.0
    %610 = vmatprep.subr.mxu0 0.0
    %611 = vmatpush2.msra.mxu0 0.0
    %612 = vmatprep.subr.mxu0 0.0
    %613 = vmatpush2.msra.mxu0 0.0
    %614 = vmatprep.subr.mxu0 0.0
    %615 = vmatpush2.msra.mxu0 0.0
    %616 = vmatprep.subr.mxu0 0.0
    %617 = vmatpush2.msra.mxu0 0.0
    %618 = vmatprep.subr.mxu0 0.0
    %619 = vmatpush2.msra.mxu0 0.0
    %620 = vmatprep.subr.mxu0 0.0
    %621 = vmatpush2.msra.mxu0 0.0
    %622 = vmatprep.subr.mxu0 0.0
    %623 = vmatpush2.msra.mxu0 0.0
    %624 = vmatprep.subr.mxu0 0.0
    %625 = vmatpush2.msra.mxu0 0.0
    %626 = vmatprep.subr.mxu0 0.0
    %627 = vmatpush2.msra.mxu0 0.0
    %628 = vmatprep.subr.mxu0 0.0
    %629 = vmatpush2.msra.mxu0 0.0
    %630 = vmatprep.subr.mxu0 0.0
    %631 = vmatpush2.msra.mxu0 0.0
    %632 = vmatprep.subr.mxu0 0.0
    %633 = vmatpush2.msra.mxu0 0.0
    %634 = vmatprep.subr.mxu0 0.0
    %635 = vmatpush2.msra.mxu0 0.0
    %636 = vmatprep.subr.mxu0 0.0
    %637 = vmatpush2.msra.mxu0 0.0
    %638 = vmatprep.mubr.f32.mxu0 0.0
    %639 = vmatmul.mubr.f32.gmra.mxu0 %v147
    %v640 = vpop.f32.mrf.mxu0
    %v641 = vadd.f32 %v572, %v640
    %v642 = vpop.f32.mrf.mxu0
    %643 = vdwg.mxu0
    %v644 = vld [vmem:[%s15] sm:$0xff]
    %v645 = vld [vmem:[%s15 + $0x8] sm:$0xff]
    %v646 = vld [vmem:[%s15 + $0x10] sm:$0xff]
    %v647 = vld [vmem:[%s15 + $0x18] sm:$0xff]
    %v648 = vld [vmem:[%s16] sm:$0x1]
    %v650 = vlaneseq
    %v651 = vshrl.u32 %v650, 7
    %v652 = vsub.s32 0, %v651
    %v653 = vrot.slane %v648, %v652
    %655 = vmatprep.subr.mxu0 0.0
    %656 = vmatpush1.msra.mxu0 0.0
    %657 = vmatprep.subr.mxu0 0.0
    %658 = vmatpush1.msra.mxu0 0.0
    %659 = vmatprep.subr.mxu0 0.0
    %660 = vmatpush1.msra.mxu0 0.0
    %661 = vmatprep.subr.mxu0 0.0
    %662 = vmatpush1.msra.mxu0 0.0
    %663 = vmatprep.subr.mxu0 0.0
    %664 = vmatpush1.msra.mxu0 0.0
    %665 = vmatprep.subr.mxu0 0.0
    %666 = vmatpush1.msra.mxu0 0.0
    %667 = vmatprep.subr.mxu0 0.0
    %668 = vmatpush1.msra.mxu0 0.0
    %669 = vmatprep.subr.mxu0 0.0
    %670 = vmatpush1.msra.mxu0 0.0
    %671 = vmatprep.subr.mxu0 0.0
    %672 = vmatpush1.msra.mxu0 0.0
    %673 = vmatprep.subr.mxu0 0.0
    %674 = vmatpush1.msra.mxu0 0.0
    %675 = vmatprep.subr.mxu0 0.0
    %676 = vmatpush1.msra.mxu0 0.0
    %677 = vmatprep.subr.mxu0 0.0
    %678 = vmatpush1.msra.mxu0 0.0
    %679 = vmatprep.subr.mxu0 0.0
    %680 = vmatpush1.msra.mxu0 %v647
    %681 = vmatprep.subr.mxu0 0.0
    %682 = vmatpush1.msra.mxu0 %v646
    %683 = vmatprep.subr.mxu0 0.0
    %684 = vmatpush1.msra.mxu0 %v645
    %685 = vmatprep.subr.mxu0 0.0
    %686 = vmatpush1.msra.mxu0 %v644
    %687 = vmatprep.subr.mxu0 0.0
    %688 = vmatpush2.msra.mxu0 0.0
    %689 = vmatprep.subr.mxu0 0.0
    %690 = vmatpush2.msra.mxu0 0.0
    %691 = vmatprep.subr.mxu0 0.0
    %692 = vmatpush2.msra.mxu0 0.0
    %693 = vmatprep.subr.mxu0 0.0
    %694 = vmatpush2.msra.mxu0 0.0
    %695 = vmatprep.subr.mxu0 0.0
    %696 = vmatpush2.msra.mxu0 0.0
    %697 = vmatprep.subr.mxu0 0.0
    %698 = vmatpush2.msra.mxu0 0.0
    %699 = vmatprep.subr.mxu0 0.0
    %700 = vmatpush2.msra.mxu0 0.0
    %701 = vmatprep.subr.mxu0 0.0
    %702 = vmatpush2.msra.mxu0 0.0
    %703 = vmatprep.subr.mxu0 0.0
    %704 = vmatpush2.msra.mxu0 0.0
    %705 = vmatprep.subr.mxu0 0.0
    %706 = vmatpush2.msra.mxu0 0.0
    %707 = vmatprep.subr.mxu0 0.0
    %708 = vmatpush2.msra.mxu0 0.0
    %709 = vmatprep.subr.mxu0 0.0
    %710 = vmatpush2.msra.mxu0 0.0
    %711 = vmatprep.subr.mxu0 0.0
    %712 = vmatpush2.msra.mxu0 0.0
    %713 = vmatprep.subr.mxu0 0.0
    %714 = vmatpush2.msra.mxu0 0.0
    %715 = vmatprep.subr.mxu0 0.0
    %716 = vmatpush2.msra.mxu0 0.0
    %717 = vmatprep.subr.mxu0 0.0
    %718 = vmatpush2.msra.mxu0 0.0
    %719 = vmatprep.mubr.f32.mxu0 0.0
    %720 = vmatmul.mubr.f32.gmra.mxu0 %v316
    %v721 = vpop.f32.mrf.mxu0
    %v722 = vadd.f32 %v653, %v721
    %v723 = vpop.f32.mrf.mxu0
    %724 = vdwg.mxu0
    %v725 = vmul.f32 %v562, %v722
    %v726 = vadd.f32 %v641, %v725
    %v727 = vtanh.pop %v726
    %v728 = vsub.f32 1.0, %v562
    %730 = vrot.lane.b32.xlu0 %v727, 32
    %v731 = vpop.permute.xlu0 %730
    %v733 = vmul.f32 %v728, %v731
    %734 = vrot.lane.b32.xlu0 %v62, 32
    %v735 = vpop.permute.xlu0 %734
    %v737 = vmul.f32 %v562, %v735
    %v738 = vadd.f32 %v733, %v737
    %740 = vset.pattern.permute.xlu0 0
    %741 = vperm.xlu0 %740, %v400
    %v742 = vpop.permute.xlu0 %741
    %v744 = vmul.f32 %v738, %v742
    %v745 = vsub.f32 1.0, %v400
    %747 = vset.pattern.permute.xlu0 0
    %748 = vperm.xlu0 %747, %v745
    %v749 = vpop.permute.xlu0 %748
    %v751 = vmul.f32 %v62, %v749
    %753 = vrot.lane.b32.xlu0 %v751, 32
    %v754 = vpop.permute.xlu0 %753
    %v756 = vadd.f32 %v744, %v754
    %758 = vrot.lane.b32.xlu0 %v756, 96
    %v759 = vpop.permute.xlu0 %758
    %761 = vst.msk [vmem:[#allocation3] sm:$0xff] %vm72, %v759
    %vm762 = vcmask 7168
    %763 = vst.msk [vmem:[%s18] sm:$0xff] %vm762, %v400
    // Predicated region
    $region70: #{lru_forward.1} parent=1 // pred_check
      _
    $region71: #{lru_forward.1} parent=1 // pred_check_branch
      %765 = sbr.rel (0) target = $region73
    $region72: #{lru_forward.1} parent=1 // pred_region
      %s767 = ssub.s32 128, 128
      %768 = vsyncadd [#allocation4], %s767
      %s770 = sshll.u32 [#allocation3], 4
      %s771 = int_to_ptr.vmem [resolvable:$true] %s770
      %773 = dma.vmem_to_hbm [thread:$0]  %s771, 128, %s17, [#allocation4]
    $region73: #{lru_forward.1} parent=1 // pred_fallthru
      _
    // Predicated region
    $region74: #{lru_forward.1} parent=1 // pred_check
      _
    $region75: #{lru_forward.1} parent=1 // pred_check_branch
      %775 = sbr.rel (0) target = $region77
    $region76: #{lru_forward.1} parent=1 // pred_region
      _
    $region77: #{lru_forward.1} parent=1 // pred_fallthru
      _
    // Predicated region
    $region78: #{lru_forward.1} parent=1 // pred_check
      _
    $region79: #{lru_forward.1} parent=1 // pred_check_branch
      %777 = sbr.rel (0) target = $region81
    $region80: #{lru_forward.1} parent=1 // pred_region
      %778 = dma.done [#allocation4], 128
    $region81: #{lru_forward.1} parent=1 // pred_fallthru
      _
    // Predicated region
    $region82: #{lru_forward.1} parent=1 // pred_check
      _
    $region83: #{lru_forward.1} parent=1 // pred_check_branch
      %780 = sbr.rel (0) target = $region85
    $region84: #{lru_forward.1} parent=1 // pred_region
      _
    $region85: #{lru_forward.1} parent=1 // pred_fallthru
      _
    %781 = vsyncpa [#allocation4], 1

</llo_original>
